<compile_context>
chip_gen: v5e
topology: v5e:2x2
jax: 0.10.0
libtpu: 0.0.40
codegen_flags: <defaults>
</compile_context>

<pallas_src>
import functools
import math

import jax
import jax.numpy as jnp
import numpy as np
from jax.experimental import pallas as pl
from jax.experimental.pallas import tpu as pltpu

_TARGET_BLOCK_BYTES = 1024 * 1024  # per-stream block size target (f32)


def _fused_kernel(*refs, beta: float, has_cw: bool, has_w: bool):
    """Elementwise weighted smooth-L1 on a lane-dense (rows, L) block."""
    idx = 0
    x_ref = refs[idx]; idx += 1
    t_ref = refs[idx]; idx += 1
    cw_ref = None
    w_ref = e_ref = None
    if has_cw:
        cw_ref = refs[idx]; idx += 1
    if has_w:
        w_ref = refs[idx]; idx += 1
        e_ref = refs[idx]; idx += 1
    o_ref = refs[idx]

    x = x_ref[...].astype(jnp.float32)          # (rows, L)
    t = t_ref[...].astype(jnp.float32)
    t = jnp.where(jnp.isnan(t), x, t)           # torch.where(isnan(target), input, target)
    diff = x - t
    if has_cw:
        diff = diff * cw_ref[...]               # (1, L) broadcast over sublanes

    n = jnp.abs(diff)
    if beta < 1e-5:
        loss = n
    else:
        loss = jnp.where(n < beta, (0.5 / beta) * n * n, n - 0.5 * beta)

    if has_w:
        # Expand compact per-anchor weights (rows, G) -> (rows, L) with a 0/1
        # selection matmul (MXU is idle in this elementwise kernel; HIGHEST
        # keeps the selection exact in f32).
        w = w_ref[...].astype(jnp.float32)      # (rows, G)
        w_exp = jnp.dot(w, e_ref[...],
                        precision=jax.lax.Precision.HIGHEST,
                        preferred_element_type=jnp.float32)  # (rows, L)
        loss = loss * w_exp

    o_ref[...] = loss.astype(o_ref.dtype)


def weighted_smooth_l1_loss(inp, target, weights=None, *, beta=1.0 / 9.0,
                            code_weights=None, block_rows=None):
    """WeightedSmoothL1Loss.forward: returns the un-reduced (B, A, C) loss."""
    B, A, C = inp.shape
    assert target.shape == (B, A, C)
    out_dtype = inp.dtype

    has_cw = code_weights is not None
    has_w = weights is not None

    L = (C * 128) // math.gcd(C, 128)           # lcm(C, 128): lane-dense row width
    G = L // C                                  # anchors per row
    N = B * A * C
    pad = (-N) % L                              # only for awkward shapes

    x_flat = inp.reshape(-1)
    t_flat = target.reshape(-1)
    if pad:
        x_flat = jnp.concatenate([x_flat, jnp.zeros((pad,), x_flat.dtype)])
        t_flat = jnp.concatenate([t_flat, jnp.zeros((pad,), t_flat.dtype)])
    R = (N + pad) // L
    x2 = x_flat.reshape(R, L)
    t2 = t_flat.reshape(R, L)

    # Row-block size: ~1 MiB per f32 stream, multiple of 8 sublanes.
    if block_rows is None:
        block_rows = max(8, (_TARGET_BLOCK_BYTES // (4 * L)) // 8 * 8)
    else:
        block_rows = max(8, (int(block_rows) // 8) * 8)
    ts = min(block_rows, R)
    num_blocks = -(-R // ts)                    # cdiv; uneven last block is masked

    data_spec = pl.BlockSpec((ts, L), lambda r: (r, 0))
    args = [x2, t2]
    in_specs = [data_spec, data_spec]

    if has_cw:
        cw = jnp.asarray(code_weights, jnp.float32).reshape(-1)
        assert cw.shape[0] == C
        cw_row = jnp.tile(cw, G).reshape(1, L)              # cw_row[l] = cw[l % C]
        args.append(cw_row)
        in_specs.append(pl.BlockSpec((1, L), lambda r: (0, 0)))

    if has_w:
        assert weights.shape == (B, A)
        w_flat = weights.reshape(-1)
        if pad:
            w_flat = jnp.concatenate([w_flat, jnp.zeros((pad // C,), w_flat.dtype)])
        w2 = w_flat.reshape(R, G)
        # E[g, l] = 1 if l // C == g else 0  (lane-expansion selector)
        e_np = (np.arange(L)[None, :] // C == np.arange(G)[:, None]).astype(np.float32)
        args += [w2, jnp.asarray(e_np)]
        in_specs += [pl.BlockSpec((ts, G), lambda r: (r, 0)),
                     pl.BlockSpec((G, L), lambda r: (0, 0))]

    kernel = functools.partial(_fused_kernel, beta=float(beta),
                               has_cw=has_cw, has_w=has_w)

    out2 = pl.pallas_call(
        kernel,
        out_shape=jax.ShapeDtypeStruct((R, L), out_dtype),
        grid_spec=pltpu.PrefetchScalarGridSpec(
            num_scalar_prefetch=0,
            grid=(num_blocks,),
            in_specs=in_specs,
            out_specs=pl.BlockSpec((ts, L), lambda r: (r, 0)),
        ),
        compiler_params=pltpu.CompilerParams(
            dimension_semantics=("parallel",)),
    )(*args)

    loss_flat = out2.reshape(-1)
    if pad:
        loss_flat = loss_flat[:N]
    return loss_flat.reshape(B, A, C)


class MergeLoss:
    """Pallas port of pcdet MergeLoss (default WeightedSmoothL1Loss per split)."""
    # TODO(synk): non-default REG_LOSS_TYPE entries in multi_losses_cfg are not
    # supported; only the default WeightedSmoothL1Loss path is implemented.

    def __init__(self, splits, code_weights, beta=1.0 / 9.0):
        self.splits = tuple(int(s) for s in splits)
        cw = np.asarray(code_weights, np.float32)
        assert cw.shape[0] == sum(self.splits)
        self.code_weights = cw
        self.beta = float(beta)

    def __call__(self, inp, target, weights):
        # One fused pass over the concatenated codes, then split per group.
        full = weighted_smooth_l1_loss(inp, target, weights, beta=self.beta,
                                       code_weights=self.code_weights)
        offs = np.cumsum(self.splits)[:-1].tolist()
        return jnp.split(full, offs, axis=-1)


# ----------------------------- pure-JAX reference -----------------------------

def _ref_weighted_smooth_l1(inp, target, weights, beta, code_weights):
    target = jnp.where(jnp.isnan(target), inp, target)
    diff = inp - target
    if code_weights is not None:
        diff = diff * jnp.asarray(code_weights, jnp.float32).reshape(1, 1, -1)
    n = jnp.abs(diff)
    loss = n if beta < 1e-5 else jnp.where(n < beta, 0.5 * n * n / beta, n - 0.5 * beta)
    if weights is not None:
        loss = loss * weights[..., None]
    return loss


def _ref_merge_loss(inp, target, weights, splits, code_weights, beta):
    offs = np.cumsum(splits)[:-1].tolist()
    cw_parts = np.split(np.asarray(code_weights), offs)
    in_parts = jnp.split(inp, offs, axis=-1)
    tg_parts = jnp.split(target, offs, axis=-1)
    return [_ref_weighted_smooth_l1(i, t, weights, beta, c)
            for i, t, c in zip(in_parts, tg_parts, cw_parts)]


if __name__ == "__main__":
    beta = 1.0 / 9.0
    splits = (6, 2)
    C = sum(splits)
    code_weights = np.linspace(0.5, 1.5, C).astype(np.float32)

    # ---- test 1: MergeLoss forward (fused kernel + output split), default tiling
    B, A = 2, 200
    key = jax.random.PRNGKey(0)
    k1, k2, k3 = jax.random.split(key, 3)
    inp = jax.random.normal(k1, (B, A, C), dtype=jnp.float32)
    target = jax.random.normal(k2, (B, A, C), dtype=jnp.float32)
    target = target.at[0, 3, 2].set(jnp.nan).at[1, 7, 5].set(jnp.nan)
    weights = jax.random.uniform(k3, (B, A), dtype=jnp.float32)

    merge_loss = MergeLoss(splits=splits, code_weights=code_weights, beta=beta)
    outs = jax.block_until_ready(merge_loss(inp, target, weights))
    refs = _ref_merge_loss(inp, target, weights, splits, code_weights, beta)
    for o, r, s in zip(outs, refs, splits):
        assert o.shape == (B, A, s)
        np.testing.assert_allclose(np.asarray(o), np.asarray(r), rtol=1e-5, atol=1e-6)

    # ---- test 2: padded + multi-block grid path (A not lane-aligned, small blocks)
    B2, A2 = 2, 201
    k4, k5, k6 = jax.random.split(jax.random.PRNGKey(1), 3)
    inp2 = jax.random.normal(k4, (B2, A2, C), dtype=jnp.float32)
    target2 = jax.random.normal(k5, (B2, A2, C), dtype=jnp.float32)
    target2 = target2.at[1, 100, 4].set(jnp.nan)
    weights2 = jax.random.uniform(k6, (B2, A2), dtype=jnp.float32)

    out2 = weighted_smooth_l1_loss(inp2, target2, weights2, beta=beta,
                                   code_weights=code_weights, block_rows=8)
    out2 = jax.block_until_ready(out2)
    ref2 = _ref_weighted_smooth_l1(inp2, target2, weights2, beta, code_weights)
    np.testing.assert_allclose(np.asarray(out2), np.asarray(ref2),
                               rtol=1e-5, atol=1e-6)

    print("KERNEL_OK")
</pallas_src>

<mosaic_0001>
module attributes {stable_mosaic.version = 11 : i64} {
  func.func @_fused_kernel(%arg0: i32, %arg1: memref<25x128xf32, #tpu.memory_space<vmem>>, %arg2: memref<25x128xf32, #tpu.memory_space<vmem>>, %arg3: memref<1x128xf32, #tpu.memory_space<vmem>>, %arg4: memref<25x16xf32, #tpu.memory_space<vmem>>, %arg5: memref<16x128xf32, #tpu.memory_space<vmem>>, %arg6: memref<25x128xf32, #tpu.memory_space<vmem>>) attributes {dimension_semantics = [#tpu.dimension_semantics<parallel>], iteration_bounds = array<i64: 1>, scalar_prefetch = 0 : i64, scratch_operands = 0 : i64, tpu.core_type = #tpu.core_type<tc>, window_params = [{transform_indices = @transform_0, window_bounds = array<i64: 25, 128>}, {transform_indices = @transform_1, window_bounds = array<i64: 25, 128>}, {pipeline_mode = #tpu.pipeline_mode<synchronous>, transform_indices = @transform_2, window_bounds = array<i64: 1, 128>}, {transform_indices = @transform_3, window_bounds = array<i64: 25, 16>}, {pipeline_mode = #tpu.pipeline_mode<synchronous>, transform_indices = @transform_4, window_bounds = array<i64: 16, 128>}, {transform_indices = @transform_5, window_bounds = array<i64: 25, 128>}]} {
    %c0 = arith.constant 0 : index
    %c0_0 = arith.constant 0 : index
    %0 = vector.load %arg1[%c0, %c0_0] : memref<25x128xf32, #tpu.memory_space<vmem>>, vector<25x128xf32>
    %c0_1 = arith.constant 0 : index
    %c0_2 = arith.constant 0 : index
    %1 = vector.load %arg2[%c0_1, %c0_2] : memref<25x128xf32, #tpu.memory_space<vmem>>, vector<25x128xf32>
    %2 = arith.cmpf one, %1, %1 : vector<25x128xf32>
    %3 = arith.select %2, %0, %1 : vector<25x128xi1>, vector<25x128xf32>
    %4 = arith.subf %0, %3 : vector<25x128xf32>
    %c0_3 = arith.constant 0 : index
    %c0_4 = arith.constant 0 : index
    %5 = vector.load %arg3[%c0_3, %c0_4] : memref<1x128xf32, #tpu.memory_space<vmem>>, vector<1x128xf32>
    %6 = vector.broadcast %5 : vector<1x128xf32> to vector<25x128xf32>
    %7 = arith.mulf %4, %6 : vector<25x128xf32>
    %8 = math.absf %7 : vector<25x128xf32>
    %cst = arith.constant 0.111111112 : f32
    %9 = vector.broadcast %cst : f32 to vector<25x128xf32>
    %10 = arith.cmpf olt, %8, %9 : vector<25x128xf32>
    %cst_5 = arith.constant 4.500000e+00 : f32
    %11 = vector.broadcast %cst_5 : f32 to vector<25x128xf32>
    %12 = arith.mulf %11, %8 : vector<25x128xf32>
    %13 = arith.mulf %12, %8 : vector<25x128xf32>
    %cst_6 = arith.constant 0.055555556 : f32
    %14 = vector.broadcast %cst_6 : f32 to vector<25x128xf32>
    %15 = arith.subf %8, %14 : vector<25x128xf32>
    %16 = arith.select %10, %13, %15 : vector<25x128xi1>, vector<25x128xf32>
    %c0_7 = arith.constant 0 : index
    %c0_8 = arith.constant 0 : index
    %17 = vector.load %arg4[%c0_7, %c0_8] : memref<25x16xf32, #tpu.memory_space<vmem>>, vector<25x16xf32>
    %c0_9 = arith.constant 0 : index
    %c0_10 = arith.constant 0 : index
    %18 = vector.load %arg5[%c0_9, %c0_10] : memref<16x128xf32, #tpu.memory_space<vmem>>, vector<16x128xf32>
    %cst_11 = arith.constant dense<0.000000e+00> : vector<25x128xf32>
    %19 = tpu.matmul %17, %18, %cst_11 {dimension_numbers = #tpu.dot_dimension_numbers<[1], [0], [0], [1], [0, 0, 1, 1], [], []>, precision = #tpu.contract_precision<fp32>} : vector<25x16xf32>, vector<16x128xf32>, vector<25x128xf32> -> vector<25x128xf32>
    %20 = arith.mulf %16, %19 : vector<25x128xf32>
    %c0_12 = arith.constant 0 : index
    %c0_13 = arith.constant 0 : index
    %21 = vector.load %arg6[%c0_12, %c0_13] : memref<25x128xf32, #tpu.memory_space<vmem>>, vector<25x128xf32>
    tpu.vector_store %arg6[%c0_12, %c0_13], %20 {strides = array<i32>} : memref<25x128xf32, #tpu.memory_space<vmem>>, vector<25x128xf32>,
    return
  }
  func.func @transform_0(%arg0: i32) -> (i32, i32) {
    %c0_i32 = arith.constant 0 : i32
    %c0_i32_0 = arith.constant 0 : i32
    return %arg0, %c0_i32 : i32, i32
  }
  func.func @transform_1(%arg0: i32) -> (i32, i32) {
    %c0_i32 = arith.constant 0 : i32
    %c0_i32_0 = arith.constant 0 : i32
    return %arg0, %c0_i32 : i32, i32
  }
  func.func @transform_2(%arg0: i32) -> (i32, i32) {
    %c0_i32 = arith.constant 0 : i32
    %c0_i32_0 = arith.constant 0 : i32
    %c0_i32_1 = arith.constant 0 : i32
    return %c0_i32, %c0_i32_0 : i32, i32
  }
  func.func @transform_3(%arg0: i32) -> (i32, i32) {
    %c0_i32 = arith.constant 0 : i32
    %c0_i32_0 = arith.constant 0 : i32
    return %arg0, %c0_i32 : i32, i32
  }
  func.func @transform_4(%arg0: i32) -> (i32, i32) {
    %c0_i32 = arith.constant 0 : i32
    %c0_i32_0 = arith.constant 0 : i32
    %c0_i32_1 = arith.constant 0 : i32
    return %c0_i32, %c0_i32_0 : i32, i32
  }
  func.func @transform_5(%arg0: i32) -> (i32, i32) {
    %c0_i32 = arith.constant 0 : i32
    %c0_i32_0 = arith.constant 0 : i32
    return %arg0, %c0_i32 : i32, i32
  }
}

</mosaic_0001>

<llo_original>
// kernel: tpu_custom_call.1
$region0: #{tpu_custom_call.1}
  #allocation0 [shape = 'u32[]', space=smem, size = 0x4, offset = 0x4, fixed_abs, tag = 'smem constant byte address 0x4 - core index']
  #allocation1 [shape = 'u32[72,128]{1,0:T(1,128)}', space=vmem, size = 0x9000, scoped, tag = 'internal scratch']
  %s0 = inlined_call_operand.vmem [shape: f32[25,128], index: 0, kind: input, shape index: {}]
  %s1 = inlined_call_operand.hbm [shape: f32[25,128], index: 1, kind: input, shape index: {}]
  %s2 = inlined_call_operand.vmem [shape: f32[1,128], index: 2, kind: input, shape index: {}]
  %s3 = inlined_call_operand.vmem [shape: f32[25,16], index: 3, kind: input, shape index: {}]
  %s4 = inlined_call_operand.vmem [shape: f32[16,128], index: 4, kind: input, shape index: {}]
  %s5 = inlined_call_operand.hbm [shape: f32[25,128], index: 5, kind: output, shape index: {}]
  %s6 = sld [smem:[#allocation0]]
  $region34: #{tpu_custom_call.1} parent=0
    _
  %s8 = ssub.s32 1, %s6
  %s9 = scalar_select 0, %s8, %s6
  $region1: #{tpu_custom_call.1} parent=0
    #allocation2 [shape = 'u8[16384]{0}', space=vmem, size = 0x4000, scoped, tag = 'input window, operand 1, single buffered']
    #allocation3 [shape = 's32[1]{0}', space=sflag, size = 0x4, scoped, tag = 'scoped memory for tpu_custom_call.1']
    #allocation4 [shape = 's32[1]{0}', space=sflag, size = 0x4, scoped, tag = 'scoped memory for tpu_custom_call.1']
    #allocation5 [shape = 'u8[16384]{0}', space=vmem, size = 0x4000, scoped, tag = 'output window, operand 0, single buffered']
    %10 = vsyncpa [#allocation3], 0
    %11 = vsyncpa [#allocation4], 0
    // Predicated region
    $region2: #{tpu_custom_call.1} parent=1 // pred_check
      _
    $region3: #{tpu_custom_call.1} parent=1 // pred_check_branch
      %13 = sbr.rel (0) target = $region5
    $region4: #{tpu_custom_call.1} parent=1 // pred_region
      _
    $region5: #{tpu_custom_call.1} parent=1 // pred_fallthru
      _
    // Predicated region
    $region6: #{tpu_custom_call.1} parent=1 // pred_check
      _
    $region7: #{tpu_custom_call.1} parent=1 // pred_check_branch
      %15 = sbr.rel (0) target = $region9
    $region8: #{tpu_custom_call.1} parent=1 // pred_region
      %17 = vsyncadd [#allocation3], 0
      %s18 = sshll.u32 %s1, 4
      %s19 = int_to_ptr.hbm [resolvable:$true] %s18
      %s20 = sshll.u32 [#allocation2], 4
      %s21 = int_to_ptr.vmem [resolvable:$true] %s20
      %26 = dma.hbm_to_vmem [thread:$0]  %s19, 512, %s21, [#allocation3], 128, 128, 8
    $region9: #{tpu_custom_call.1} parent=1 // pred_fallthru
      _
    // Predicated region
    $region10: #{tpu_custom_call.1} parent=1 // pred_check
      _
    $region11: #{tpu_custom_call.1} parent=1 // pred_check_branch
      %28 = sbr.rel (0) target = $region13
    $region12: #{tpu_custom_call.1} parent=1 // pred_region
      _
    $region13: #{tpu_custom_call.1} parent=1 // pred_fallthru
      _
    // Predicated region
    $region14: #{tpu_custom_call.1} parent=1 // pred_check
      _
    $region15: #{tpu_custom_call.1} parent=1 // pred_check_branch
      %30 = sbr.rel (0) target = $region17
    $region16: #{tpu_custom_call.1} parent=1 // pred_region
      _
    $region17: #{tpu_custom_call.1} parent=1 // pred_fallthru
      _
    // Predicated region
    $region18: #{tpu_custom_call.1} parent=1 // pred_check
      _
    $region19: #{tpu_custom_call.1} parent=1 // pred_check_branch
      %32 = sbr.rel (0) target = $region21
    $region20: #{tpu_custom_call.1} parent=1 // pred_region
      _
    $region21: #{tpu_custom_call.1} parent=1 // pred_fallthru
      _
    // Predicated region
    $region22: #{tpu_custom_call.1} parent=1 // pred_check
      _
    $region23: #{tpu_custom_call.1} parent=1 // pred_check_branch
      %34 = sbr.rel (0) target = $region25
    $region24: #{tpu_custom_call.1} parent=1 // pred_region
      %36 = dma.done [#allocation3], 512
    $region25: #{tpu_custom_call.1} parent=1 // pred_fallthru
      _
    %v37 = vld [vmem:[%s0] sm:$0xff]
    %v38 = vld [vmem:[%s0 + $0x8] sm:$0xff]
    %v39 = vld [vmem:[%s0 + $0x10] sm:$0xff]
    %v40 = vld [vmem:[%s0 + $0x18] sm:$0x1]
    %v41 = vld [vmem:[#allocation2] sm:$0xff]
    %v42 = vld [vmem:[#allocation2 + $0x8] sm:$0xff]
    %v43 = vld [vmem:[#allocation2 + $0x10] sm:$0xff]
    %v44 = vld [vmem:[#allocation2 + $0x18] sm:$0x1]
    %vm45 = vcmp.ne.f32.partialorder %v41, %v41
    %vm46 = vcmp.ne.f32.partialorder %v42, %v42
    %vm47 = vcmp.ne.f32.partialorder %v43, %v43
    %vm48 = vcmp.ne.f32.partialorder %v44, %v44
    %v49 = vsel %vm45, %v37, %v41
    %v50 = vsel %vm46, %v38, %v42
    %v51 = vsel %vm47, %v39, %v43
    %v52 = vsel %vm48, %v40, %v44
    %v53 = vsub.f32 %v37, %v49
    %v54 = vsub.f32 %v38, %v50
    %v55 = vsub.f32 %v39, %v51
    %v56 = vsub.f32 %v40, %v52
    %v57 = vld [vmem:[%s2] sm:$0x1]
    %v59 = vperm.slane %v57, 0
    %v61 = vmul.f32 %v53, %v59
    %v62 = vmul.f32 %v54, %v59
    %v63 = vmul.f32 %v55, %v59
    %v64 = vmul.f32 %v56, %v59
    %v65 = vand.u32 2147483647, %v61
    %v66 = vand.u32 2147483647, %v62
    %v67 = vand.u32 2147483647, %v63
    %v68 = vand.u32 2147483647, %v64
    %vm69 = vcmp.lt.f32.partialorder %v65, 0.11111111
    %vm70 = vcmp.lt.f32.partialorder %v66, 0.11111111
    %vm71 = vcmp.lt.f32.partialorder %v67, 0.11111111
    %vm72 = vcmp.lt.f32.partialorder %v68, 0.11111111
    %v73 = vmul.f32 %v65, 4.5
    %v74 = vmul.f32 %v66, 4.5
    %v75 = vmul.f32 %v67, 4.5
    %v76 = vmul.f32 %v68, 4.5
    %v77 = vmul.f32 %v73, %v65
    %v78 = vmul.f32 %v74, %v66
    %v79 = vmul.f32 %v75, %v67
    %v80 = vmul.f32 %v76, %v68
    %v81 = vsub.f32 %v65, 0.055555556
    %v82 = vsub.f32 %v66, 0.055555556
    %v83 = vsub.f32 %v67, 0.055555556
    %v84 = vsub.f32 %v68, 0.055555556
    %v85 = vsel %vm69, %v77, %v81
    %v86 = vsel %vm70, %v78, %v82
    %v87 = vsel %vm71, %v79, %v83
    %v88 = vsel %vm72, %v80, %v84
    %v89 = vld [vmem:[%s3] sm:$0xff]
    %v90 = vld [vmem:[%s3 + $0x8] sm:$0xff]
    %v91 = vld [vmem:[%s3 + $0x10] sm:$0xff]
    %v92 = vld [vmem:[%s3 + $0x18] sm:$0x1]
    %v93 = vld [vmem:[%s4] sm:$0xff]
    %v94 = vld [vmem:[%s4 + $0x8] sm:$0xff]
    %vm95 = vcmask 130048
    %v97 = vsel %vm95, %v89, 0
    %v100 = vsel %vm95, %v90, 0
    %v103 = vsel %vm95, %v91, 0
    %v106 = vsel %vm95, %v92, 0
    %108 = vmatpush.msra.mxu0 0.0
    %109 = vmatpush.msra.mxu0 0.0
    %110 = vmatpush.msra.mxu0 0.0
    %111 = vmatpush.msra.mxu0 0.0
    %112 = vmatpush.msra.mxu0 0.0
    %113 = vmatpush.msra.mxu0 0.0
    %114 = vmatpush.msra.mxu0 0.0
    %115 = vmatpush.msra.mxu0 0.0
    %116 = vmatpush.msra.mxu0 0.0
    %117 = vmatpush.msra.mxu0 0.0
    %118 = vmatpush.msra.mxu0 0.0
    %119 = vmatpush.msra.mxu0 0.0
    %120 = vmatpush.msra.mxu0 0.0
    %121 = vmatpush.msra.mxu0 0.0
    %v122 = vand.u32 %v94, 4294901760
    %123 = vmatpush.msra.mxu0 %v122
    %v124 = vand.u32 %v93, 4294901760
    %125 = vmatpush.msra.mxu0 %v124
    %v126 = vand.u32 %v97, 4294901760
    %v127 = vsub.f32 %v97, %v126
    %v128 = vand.u32 %v127, 4294901760
    %v129 = vsub.f32 %v127, %v128
    %v130 = vand.u32 %v129, 4294901760
    %131 = vmatmul.f32.gmra.mxu0 %v130
    %v132 = vpop.f32.mrf.mxu0
    %v133 = vadd.f32 0.0, %v132
    %v134 = vand.u32 %v100, 4294901760
    %v135 = vsub.f32 %v100, %v134
    %v136 = vand.u32 %v135, 4294901760
    %v137 = vsub.f32 %v135, %v136
    %v138 = vand.u32 %v137, 4294901760
    %139 = vmatmul.f32.gmra.mxu0 %v138
    %v140 = vpop.f32.mrf.mxu0
    %v141 = vadd.f32 0.0, %v140
    %v142 = vand.u32 %v103, 4294901760
    %v143 = vsub.f32 %v103, %v142
    %v144 = vand.u32 %v143, 4294901760
    %v145 = vsub.f32 %v143, %v144
    %v146 = vand.u32 %v145, 4294901760
    %147 = vmatmul.f32.gmra.mxu0 %v146
    %v148 = vpop.f32.mrf.mxu0
    %v149 = vadd.f32 0.0, %v148
    %v150 = vand.u32 %v106, 4294901760
    %v151 = vsub.f32 %v106, %v150
    %v152 = vand.u32 %v151, 4294901760
    %v153 = vsub.f32 %v151, %v152
    %v154 = vand.u32 %v153, 4294901760
    %155 = vmatmul.f32.gmra.mxu0 %v154
    %v156 = vpop.f32.mrf.mxu0
    %v157 = vadd.f32 0.0, %v156
    %158 = vdwg.mxu0
    %159 = vmatpush.msra.mxu0 0.0
    %160 = vmatpush.msra.mxu0 0.0
    %161 = vmatpush.msra.mxu0 0.0
    %162 = vmatpush.msra.mxu0 0.0
    %163 = vmatpush.msra.mxu0 0.0
    %164 = vmatpush.msra.mxu0 0.0
    %165 = vmatpush.msra.mxu0 0.0
    %166 = vmatpush.msra.mxu0 0.0
    %167 = vmatpush.msra.mxu0 0.0
    %168 = vmatpush.msra.mxu0 0.0
    %169 = vmatpush.msra.mxu0 0.0
    %170 = vmatpush.msra.mxu0 0.0
    %171 = vmatpush.msra.mxu0 0.0
    %172 = vmatpush.msra.mxu0 0.0
    %v173 = vand.u32 %v94, 4294901760
    %v174 = vsub.f32 %v94, %v173
    %v175 = vand.u32 %v174, 4294901760
    %v176 = vsub.f32 %v174, %v175
    %v177 = vand.u32 %v176, 4294901760
    %178 = vmatpush.msra.mxu0 %v177
    %v179 = vand.u32 %v93, 4294901760
    %v180 = vsub.f32 %v93, %v179
    %v181 = vand.u32 %v180, 4294901760
    %v182 = vsub.f32 %v180, %v181
    %v183 = vand.u32 %v182, 4294901760
    %184 = vmatpush.msra.mxu0 %v183
    %v185 = vand.u32 %v97, 4294901760
    %186 = vmatmul.f32.gmra.mxu0 %v185
    %v187 = vpop.f32.mrf.mxu0
    %v188 = vadd.f32 %v133, %v187
    %v189 = vand.u32 %v100, 4294901760
    %190 = vmatmul.f32.gmra.mxu0 %v189
    %v191 = vpop.f32.mrf.mxu0
    %v192 = vadd.f32 %v141, %v191
    %v193 = vand.u32 %v103, 4294901760
    %194 = vmatmul.f32.gmra.mxu0 %v193
    %v195 = vpop.f32.mrf.mxu0
    %v196 = vadd.f32 %v149, %v195
    %v197 = vand.u32 %v106, 4294901760
    %198 = vmatmul.f32.gmra.mxu0 %v197
    %v199 = vpop.f32.mrf.mxu0
    %v200 = vadd.f32 %v157, %v199
    %201 = vdwg.mxu0
    %202 = vmatpush.msra.mxu0 0.0
    %203 = vmatpush.msra.mxu0 0.0
    %204 = vmatpush.msra.mxu0 0.0
    %205 = vmatpush.msra.mxu0 0.0
    %206 = vmatpush.msra.mxu0 0.0
    %207 = vmatpush.msra.mxu0 0.0
    %208 = vmatpush.msra.mxu0 0.0
    %209 = vmatpush.msra.mxu0 0.0
    %210 = vmatpush.msra.mxu0 0.0
    %211 = vmatpush.msra.mxu0 0.0
    %212 = vmatpush.msra.mxu0 0.0
    %213 = vmatpush.msra.mxu0 0.0
    %214 = vmatpush.msra.mxu0 0.0
    %215 = vmatpush.msra.mxu0 0.0
    %v216 = vand.u32 %v94, 4294901760
    %v217 = vsub.f32 %v94, %v216
    %218 = vmatpush.msra.mxu0 %v217
    %v219 = vand.u32 %v93, 4294901760
    %v220 = vsub.f32 %v93, %v219
    %221 = vmatpush.msra.mxu0 %v220
    %v222 = vand.u32 %v97, 4294901760
    %v223 = vsub.f32 %v97, %v222
    %224 = vmatmul.f32.gmra.mxu0 %v223
    %v225 = vpop.f32.mrf.mxu0
    %v226 = vadd.f32 %v188, %v225
    %v227 = vand.u32 %v100, 4294901760
    %v228 = vsub.f32 %v100, %v227
    %229 = vmatmul.f32.gmra.mxu0 %v228
    %v230 = vpop.f32.mrf.mxu0
    %v231 = vadd.f32 %v192, %v230
    %v232 = vand.u32 %v103, 4294901760
    %v233 = vsub.f32 %v103, %v232
    %234 = vmatmul.f32.gmra.mxu0 %v233
    %v235 = vpop.f32.mrf.mxu0
    %v236 = vadd.f32 %v196, %v235
    %v237 = vand.u32 %v106, 4294901760
    %v238 = vsub.f32 %v106, %v237
    %239 = vmatmul.f32.gmra.mxu0 %v238
    %v240 = vpop.f32.mrf.mxu0
    %v241 = vadd.f32 %v200, %v240
    %242 = vdwg.mxu0
    %243 = vmatpush.msra.mxu0 0.0
    %244 = vmatpush.msra.mxu0 0.0
    %245 = vmatpush.msra.mxu0 0.0
    %246 = vmatpush.msra.mxu0 0.0
    %247 = vmatpush.msra.mxu0 0.0
    %248 = vmatpush.msra.mxu0 0.0
    %249 = vmatpush.msra.mxu0 0.0
    %250 = vmatpush.msra.mxu0 0.0
    %251 = vmatpush.msra.mxu0 0.0
    %252 = vmatpush.msra.mxu0 0.0
    %253 = vmatpush.msra.mxu0 0.0
    %254 = vmatpush.msra.mxu0 0.0
    %255 = vmatpush.msra.mxu0 0.0
    %256 = vmatpush.msra.mxu0 0.0
    %v257 = vand.u32 %v94, 4294901760
    %258 = vmatpush.msra.mxu0 %v257
    %v259 = vand.u32 %v93, 4294901760
    %260 = vmatpush.msra.mxu0 %v259
    %v261 = vand.u32 %v97, 4294901760
    %v262 = vsub.f32 %v97, %v261
    %v263 = vand.u32 %v262, 4294901760
    %264 = vmatmul.f32.gmra.mxu0 %v263
    %v265 = vpop.f32.mrf.mxu0
    %v266 = vadd.f32 %v226, %v265
    %v267 = vand.u32 %v100, 4294901760
    %v268 = vsub.f32 %v100, %v267
    %v269 = vand.u32 %v268, 4294901760
    %270 = vmatmul.f32.gmra.mxu0 %v269
    %v271 = vpop.f32.mrf.mxu0
    %v272 = vadd.f32 %v231, %v271
    %v273 = vand.u32 %v103, 4294901760
    %v274 = vsub.f32 %v103, %v273
    %v275 = vand.u32 %v274, 4294901760
    %276 = vmatmul.f32.gmra.mxu0 %v275
    %v277 = vpop.f32.mrf.mxu0
    %v278 = vadd.f32 %v236, %v277
    %v279 = vand.u32 %v106, 4294901760
    %v280 = vsub.f32 %v106, %v279
    %v281 = vand.u32 %v280, 4294901760
    %282 = vmatmul.f32.gmra.mxu0 %v281
    %v283 = vpop.f32.mrf.mxu0
    %v284 = vadd.f32 %v241, %v283
    %285 = vdwg.mxu0
    %286 = vmatpush.msra.mxu0 0.0
    %287 = vmatpush.msra.mxu0 0.0
    %288 = vmatpush.msra.mxu0 0.0
    %289 = vmatpush.msra.mxu0 0.0
    %290 = vmatpush.msra.mxu0 0.0
    %291 = vmatpush.msra.mxu0 0.0
    %292 = vmatpush.msra.mxu0 0.0
    %293 = vmatpush.msra.mxu0 0.0
    %294 = vmatpush.msra.mxu0 0.0
    %295 = vmatpush.msra.mxu0 0.0
    %296 = vmatpush.msra.mxu0 0.0
    %297 = vmatpush.msra.mxu0 0.0
    %298 = vmatpush.msra.mxu0 0.0
    %299 = vmatpush.msra.mxu0 0.0
    %v300 = vand.u32 %v94, 4294901760
    %v301 = vsub.f32 %v94, %v300
    %v302 = vand.u32 %v301, 4294901760
    %303 = vmatpush.msra.mxu0 %v302
    %v304 = vand.u32 %v93, 4294901760
    %v305 = vsub.f32 %v93, %v304
    %v306 = vand.u32 %v305, 4294901760
    %307 = vmatpush.msra.mxu0 %v306
    %v308 = vand.u32 %v97, 4294901760
    %309 = vmatmul.f32.gmra.mxu0 %v308
    %v310 = vpop.f32.mrf.mxu0
    %v311 = vadd.f32 %v266, %v310
    %v312 = vand.u32 %v100, 4294901760
    %313 = vmatmul.f32.gmra.mxu0 %v312
    %v314 = vpop.f32.mrf.mxu0
    %v315 = vadd.f32 %v272, %v314
    %v316 = vand.u32 %v103, 4294901760
    %317 = vmatmul.f32.gmra.mxu0 %v316
    %v318 = vpop.f32.mrf.mxu0
    %v319 = vadd.f32 %v278, %v318
    %v320 = vand.u32 %v106, 4294901760
    %321 = vmatmul.f32.gmra.mxu0 %v320
    %v322 = vpop.f32.mrf.mxu0
    %v323 = vadd.f32 %v284, %v322
    %324 = vdwg.mxu0
    %325 = vmatpush.msra.mxu0 0.0
    %326 = vmatpush.msra.mxu0 0.0
    %327 = vmatpush.msra.mxu0 0.0
    %328 = vmatpush.msra.mxu0 0.0
    %329 = vmatpush.msra.mxu0 0.0
    %330 = vmatpush.msra.mxu0 0.0
    %331 = vmatpush.msra.mxu0 0.0
    %332 = vmatpush.msra.mxu0 0.0
    %333 = vmatpush.msra.mxu0 0.0
    %334 = vmatpush.msra.mxu0 0.0
    %335 = vmatpush.msra.mxu0 0.0
    %336 = vmatpush.msra.mxu0 0.0
    %337 = vmatpush.msra.mxu0 0.0
    %338 = vmatpush.msra.mxu0 0.0
    %v339 = vand.u32 %v94, 4294901760
    %340 = vmatpush.msra.mxu0 %v339
    %v341 = vand.u32 %v93, 4294901760
    %342 = vmatpush.msra.mxu0 %v341
    %v343 = vand.u32 %v97, 4294901760
    %344 = vmatmul.f32.gmra.mxu0 %v343
    %v345 = vpop.f32.mrf.mxu0
    %v346 = vadd.f32 %v311, %v345
    %v347 = vand.u32 %v100, 4294901760
    %348 = vmatmul.f32.gmra.mxu0 %v347
    %v349 = vpop.f32.mrf.mxu0
    %v350 = vadd.f32 %v315, %v349
    %v351 = vand.u32 %v103, 4294901760
    %352 = vmatmul.f32.gmra.mxu0 %v351
    %v353 = vpop.f32.mrf.mxu0
    %v354 = vadd.f32 %v319, %v353
    %v355 = vand.u32 %v106, 4294901760
    %356 = vmatmul.f32.gmra.mxu0 %v355
    %v357 = vpop.f32.mrf.mxu0
    %v358 = vadd.f32 %v323, %v357
    %359 = vdwg.mxu0
    %v360 = vmul.f32 %v85, %v346
    %v361 = vmul.f32 %v86, %v350
    %v362 = vmul.f32 %v87, %v354
    %v363 = vmul.f32 %v88, %v358
    %364 = vst [vmem:[#allocation5] sm:$0xff] %v360
    %365 = vst [vmem:[#allocation5 + $0x8] sm:$0xff] %v361
    %366 = vst [vmem:[#allocation5 + $0x10] sm:$0xff] %v362
    %367 = vst [vmem:[#allocation5 + $0x18] sm:$0x1] %v363
    // Predicated region
    $region26: #{tpu_custom_call.1} parent=1 // pred_check
      _
    $region27: #{tpu_custom_call.1} parent=1 // pred_check_branch
      %369 = sbr.rel (0) target = $region29
    $region28: #{tpu_custom_call.1} parent=1 // pred_region
      %371 = vsyncadd [#allocation4], 0
      %s372 = sshll.u32 [#allocation5], 4
      %s373 = int_to_ptr.vmem [resolvable:$true] %s372
      %s374 = sshll.u32 %s5, 4
      %s375 = int_to_ptr.hbm [resolvable:$true] %s374
      %380 = dma.vmem_to_hbm [thread:$0]  %s373, 512, %s375, [#allocation4], 128, 128, 8
    $region29: #{tpu_custom_call.1} parent=1 // pred_fallthru
      _
    // Predicated region
    $region30: #{tpu_custom_call.1} parent=1 // pred_check
      _
    $region31: #{tpu_custom_call.1} parent=1 // pred_check_branch
      %382 = sbr.rel (0) target = $region33
    $region32: #{tpu_custom_call.1} parent=1 // pred_region
      %384 = dma.done [#allocation4], 512
    $region33: #{tpu_custom_call.1} parent=1 // pred_fallthru
      _
    %385 = vsyncpa [#allocation3], 1
    %386 = vsyncpa [#allocation4], 1

</llo_original>
